<compile_context>
chip_gen: v7x
topology: tpu7x:2x2x1
jax: 0.10.0
libtpu: 0.0.40
codegen_flags: <defaults>
</compile_context>

<pallas_src>
import jax
import jax.numpy as jnp
from jax.experimental import pallas as pl
from jax.experimental.pallas import tpu as pltpu


def _round_up(x, m):
    return ((x + m - 1) // m) * m


def fm_kernel(x2d_ref, x_in_ref, w1_sp_ref, w1_in_ref, b1_ref,
              w_out_ref, b_out_ref, out_ref):
    """Per-batch-tile FM forward up to (and including) the output linear.

    x2d_ref  : (Bt, F*E)   lane-dense flattened sparse features
    x_in_ref : (Bt, Din)   inner-block features
    w1_sp_ref: (F*E, 2E)   [S | 0]          (S = 0/1 field-sum matrix)
    w1_in_ref: (Din, 2E)   [w_emb | w_emb]
    b1_ref   : (1, 2E)     [b_emb | b_emb]
    out_ref  : (Bt, D)     pre-BatchNorm linear output
    """
    E = w_out_ref.shape[0]

    x2d = x2d_ref[...]
    x_in = x_in_ref[...]
    w1_sp = w1_sp_ref[...]

    # One 2E-wide combined result: [ sum_fields | emb ].
    #   sum_fields = x2d @ S + x_in @ w_emb + b_emb
    #   emb        =           x_in @ w_emb + b_emb
    comb = (jnp.dot(x2d, w1_sp, preferred_element_type=jnp.float32)
            + jnp.dot(x_in, w1_in_ref[...], preferred_element_type=jnp.float32)
            + b1_ref[...])                                        # (Bt, 2E)
    sum_fields = comb[:, :E]                                      # (Bt, E)
    emb = comb[:, E:]                                             # (Bt, E)

    # Squared-field sum over the sparse fields; reuses the same resident W1_sp
    # (its left half is S, right half zeros -> free extra MXU columns).
    sum_sq_fields = (jnp.dot(x2d * x2d, w1_sp,
                             preferred_element_type=jnp.float32)[:, :E]
                     + emb * emb)                                 # (Bt, E)

    # FM second-order interaction.
    final = 0.5 * (sum_fields * sum_fields - sum_sq_fields)       # (Bt, E)

    # _output_linear (BatchNorm/ReLU applied outside on the full batch).
    out = jnp.dot(final, w_out_ref[...],
                  preferred_element_type=jnp.float32) + b_out_ref[...]        # (Bt, D)
    out_ref[...] = out.astype(out_ref.dtype)


def fm_forward(x_sparse, x_inner, w_emb, b_emb, w_out, b_out, gamma, beta,
               *, b_tile=None):
    """Full FM block forward: Pallas kernel for the linear/FM part, XLA for BN+ReLU."""
    B, F, E = x_sparse.shape
    Din = x_inner.shape[1]
    D = w_out.shape[1]
    FE = F * E

    # Lane-dense layout: (B, F, E) -> (B, F*E); row-major reshape, no data movement.
    x2d = x_sparse.reshape(B, FE).astype(jnp.float32)
    x_in = x_inner.astype(jnp.float32)

    # Tiny resident combined weights (built once, negligible HBM).
    row = jax.lax.broadcasted_iota(jnp.int32, (FE, E), 0)
    col = jax.lax.broadcasted_iota(jnp.int32, (FE, E), 1)
    s_mat = (row % E == col).astype(jnp.float32)                  # S[f*E+e, e] = 1
    w1_sp = jnp.concatenate([s_mat, jnp.zeros((FE, E), jnp.float32)], axis=1)  # (FE, 2E)
    w1_in = jnp.concatenate([w_emb.astype(jnp.float32)] * 2, axis=1)           # (Din, 2E)
    b1 = jnp.concatenate([b_emb.astype(jnp.float32)] * 2, axis=1)              # (1, 2E)

    # Batch tile: >=2 grid steps for large B (v7x megacore), capped at 4096 rows so the
    # double-buffered working set (~17 MiB at 4096) fits comfortably in v7x's 64 MiB VMEM
    # while still being big enough to amortize per-step overhead on v5e/v6e.
    if b_tile is None:
        b_tile = min(4096, max(8, _round_up(pl.cdiv(B, 2), 8)))
    b_tile = max(8, _round_up(b_tile, 8))

    grid = (pl.cdiv(B, b_tile),)   # last tile may be partial: Pallas masks the tail rows.

    cost = pl.CostEstimate(
        flops=2 * B * (2 * FE * 2 * E + Din * 2 * E + E * D) + 8 * B * E,
        transcendentals=0,
        bytes_accessed=4 * (B * (FE + Din + D)
                            + FE * 2 * E + Din * 2 * E + 2 * E + E * D + D),
    )

    lin = pl.pallas_call(
        fm_kernel,
        out_shape=jax.ShapeDtypeStruct((B, D), jnp.float32),
        grid_spec=pltpu.PrefetchScalarGridSpec(
            num_scalar_prefetch=0,
            grid=grid,
            in_specs=[
                pl.BlockSpec((b_tile, FE), lambda i: (i, 0)),    # x_sparse (flattened)
                pl.BlockSpec((b_tile, Din), lambda i: (i, 0)),   # x_inner
                pl.BlockSpec((FE, 2 * E), lambda i: (0, 0)),     # [S | 0]       (resident)
                pl.BlockSpec((Din, 2 * E), lambda i: (0, 0)),    # [w_emb|w_emb] (resident)
                pl.BlockSpec((1, 2 * E), lambda i: (0, 0)),      # [b_emb|b_emb] (resident)
                pl.BlockSpec((E, D), lambda i: (0, 0)),          # w_out         (resident)
                pl.BlockSpec((1, D), lambda i: (0, 0)),          # b_out         (resident)
            ],
            out_specs=pl.BlockSpec((b_tile, D), lambda i: (i, 0)),
        ),
        compiler_params=pltpu.CompilerParams(
            dimension_semantics=("parallel",),       # batch tiles independent -> megacore on v7x
            vmem_limit_bytes=48 * 1024 * 1024,       # safe on v7x 64MiB/TC; ample on v5e/v6e
        ),
        cost_estimate=cost,
    )(x2d, x_in, w1_sp, w1_in, b1, w_out, b_out)

    # BatchNorm1d (training-mode per-batch mean / biased variance, eps=1e-5) + ReLU,
    # computed in XLA over the FULL batch (tiny (B, D) tensor; keeps kernel tiles parallel).
    # `lin` is exactly (B, D): partial-tile tail rows were masked out by Pallas, so the
    # batch statistics are unbiased.
    mean = jnp.mean(lin, axis=0, keepdims=True)
    var = jnp.mean(jnp.square(lin - mean), axis=0, keepdims=True)
    xhat = (lin - mean) * jax.lax.rsqrt(var + 1e-5)
    out = gamma * xhat + beta
    out = jnp.maximum(out, 0.0)
    # TODO(synk): nn.Dropout in training mode is stochastic; treated as eval-mode identity.
    # TODO(synk): BatchNorm running-stats update (momentum) not emulated.
    return out


if __name__ == "__main__":
    # Small config consistent with the module's params dict.
    batch = 8
    embedding_dim = 32     # params['embedding_dim']
    block_in_dim = 24      # params['block_in_dim']
    block_out_dim = 16     # params['block_out_dim']
    num_sparse_feats = 5   # params['num_sparse_feats']

    key = jax.random.PRNGKey(0)
    k_xs, k_xi, k_we, k_be, k_wo, k_bo = jax.random.split(key, 6)

    # Example inputs: [(x_sparse, 2), (x_inner, 3)]
    x_sparse = jax.random.normal(k_xs, (batch, num_sparse_feats, embedding_dim), jnp.float32)
    x_inner = jax.random.normal(k_xi, (batch, block_in_dim), jnp.float32)

    # Deterministic parameter init (PyTorch-Linear-style uniform bounds), stored as (in, out).
    bound_emb = 1.0 / (block_in_dim ** 0.5)
    w_emb = jax.random.uniform(k_we, (block_in_dim, embedding_dim), jnp.float32,
                               -bound_emb, bound_emb)
    b_emb = jax.random.uniform(k_be, (1, embedding_dim), jnp.float32, -bound_emb, bound_emb)

    bound_out = 1.0 / (embedding_dim ** 0.5)
    w_out = jax.random.uniform(k_wo, (embedding_dim, block_out_dim), jnp.float32,
                               -bound_out, bound_out)
    b_out = jax.random.uniform(k_bo, (1, block_out_dim), jnp.float32, -bound_out, bound_out)

    # BatchNorm1d affine params at their PyTorch defaults.
    gamma = jnp.ones((1, block_out_dim), jnp.float32)
    beta = jnp.zeros((1, block_out_dim), jnp.float32)

    out = fm_forward(x_sparse, x_inner, w_emb, b_emb, w_out, b_out, gamma, beta)
    jax.block_until_ready(out)
    assert out.shape == (batch, block_out_dim)

    # Pure-JAX reference check of the fused FM + linear + BN + ReLU forward.
    emb_ref = x_inner @ w_emb + b_emb
    x_cat = jnp.concatenate([x_sparse, emb_ref[:, None, :]], axis=1)
    final_ref = 0.5 * (jnp.sum(x_cat, axis=1) ** 2 - jnp.sum(x_cat ** 2, axis=1))
    lin_ref = final_ref @ w_out + b_out
    m = jnp.mean(lin_ref, axis=0, keepdims=True)
    v = jnp.mean((lin_ref - m) ** 2, axis=0, keepdims=True)
    ref = jnp.maximum(gamma * (lin_ref - m) * jax.lax.rsqrt(v + 1e-5) + beta, 0.0)
    assert jnp.allclose(out, ref, atol=1e-4, rtol=1e-4)

    print("KERNEL_OK")
</pallas_src>

<mosaic_0001>
module attributes {stable_mosaic.version = 11 : i64} {
  func.func @fm_kernel(%arg0: i32, %arg1: memref<8x160xf32, #tpu.memory_space<vmem>>, %arg2: memref<8x24xf32, #tpu.memory_space<vmem>>, %arg3: memref<160x64xf32, #tpu.memory_space<vmem>>, %arg4: memref<24x64xf32, #tpu.memory_space<vmem>>, %arg5: memref<1x64xf32, #tpu.memory_space<vmem>>, %arg6: memref<32x16xf32, #tpu.memory_space<vmem>>, %arg7: memref<1x16xf32, #tpu.memory_space<vmem>>, %arg8: memref<8x16xf32, #tpu.memory_space<vmem>>) attributes {dimension_semantics = [#tpu.dimension_semantics<parallel>], iteration_bounds = array<i64: 1>, scalar_prefetch = 0 : i64, scratch_operands = 0 : i64, tpu.core_type = #tpu.core_type<tc>, window_params = [{transform_indices = @transform_0, window_bounds = array<i64: 8, 160>}, {transform_indices = @transform_1, window_bounds = array<i64: 8, 24>}, {pipeline_mode = #tpu.pipeline_mode<synchronous>, transform_indices = @transform_2, window_bounds = array<i64: 160, 64>}, {pipeline_mode = #tpu.pipeline_mode<synchronous>, transform_indices = @transform_3, window_bounds = array<i64: 24, 64>}, {pipeline_mode = #tpu.pipeline_mode<synchronous>, transform_indices = @transform_4, window_bounds = array<i64: 1, 64>}, {pipeline_mode = #tpu.pipeline_mode<synchronous>, transform_indices = @transform_5, window_bounds = array<i64: 32, 16>}, {pipeline_mode = #tpu.pipeline_mode<synchronous>, transform_indices = @transform_6, window_bounds = array<i64: 1, 16>}, {transform_indices = @transform_7, window_bounds = array<i64: 8, 16>}]} {
    %c0 = arith.constant 0 : index
    %c0_0 = arith.constant 0 : index
    %0 = vector.load %arg1[%c0, %c0_0] : memref<8x160xf32, #tpu.memory_space<vmem>>, vector<8x160xf32>
    %c0_1 = arith.constant 0 : index
    %c0_2 = arith.constant 0 : index
    %1 = vector.load %arg2[%c0_1, %c0_2] : memref<8x24xf32, #tpu.memory_space<vmem>>, vector<8x24xf32>
    %c0_3 = arith.constant 0 : index
    %c0_4 = arith.constant 0 : index
    %2 = vector.load %arg3[%c0_3, %c0_4] : memref<160x64xf32, #tpu.memory_space<vmem>>, vector<160x64xf32>
    %cst = arith.constant dense<0.000000e+00> : vector<8x64xf32>
    %3 = tpu.matmul %0, %2, %cst {dimension_numbers = #tpu.dot_dimension_numbers<[1], [0], [0], [1], [0, 0, 1, 1], [], []>} : vector<8x160xf32>, vector<160x64xf32>, vector<8x64xf32> -> vector<8x64xf32>
    %c0_5 = arith.constant 0 : index
    %c0_6 = arith.constant 0 : index
    %4 = vector.load %arg4[%c0_5, %c0_6] : memref<24x64xf32, #tpu.memory_space<vmem>>, vector<24x64xf32>
    %cst_7 = arith.constant dense<0.000000e+00> : vector<8x64xf32>
    %5 = tpu.matmul %1, %4, %cst_7 {dimension_numbers = #tpu.dot_dimension_numbers<[1], [0], [0], [1], [0, 0, 1, 1], [], []>} : vector<8x24xf32>, vector<24x64xf32>, vector<8x64xf32> -> vector<8x64xf32>
    %6 = arith.addf %3, %5 : vector<8x64xf32>
    %c0_8 = arith.constant 0 : index
    %c0_9 = arith.constant 0 : index
    %7 = vector.load %arg5[%c0_8, %c0_9] : memref<1x64xf32, #tpu.memory_space<vmem>>, vector<1x64xf32>
    %8 = vector.broadcast %7 : vector<1x64xf32> to vector<8x64xf32>
    %9 = arith.addf %6, %8 : vector<8x64xf32>
    %10 = vector.extract_strided_slice %9 {offsets = [0, 0], sizes = [8, 32], strides = [1, 1]} : vector<8x64xf32> to vector<8x32xf32>
    %11 = vector.extract_strided_slice %9 {offsets = [0, 32], sizes = [8, 32], strides = [1, 1]} : vector<8x64xf32> to vector<8x32xf32>
    %12 = arith.mulf %0, %0 : vector<8x160xf32>
    %cst_10 = arith.constant dense<0.000000e+00> : vector<8x64xf32>
    %13 = tpu.matmul %12, %2, %cst_10 {dimension_numbers = #tpu.dot_dimension_numbers<[1], [0], [0], [1], [0, 0, 1, 1], [], []>} : vector<8x160xf32>, vector<160x64xf32>, vector<8x64xf32> -> vector<8x64xf32>
    %14 = vector.extract_strided_slice %13 {offsets = [0, 0], sizes = [8, 32], strides = [1, 1]} : vector<8x64xf32> to vector<8x32xf32>
    %15 = arith.mulf %11, %11 : vector<8x32xf32>
    %16 = arith.addf %14, %15 : vector<8x32xf32>
    %17 = arith.mulf %10, %10 : vector<8x32xf32>
    %18 = arith.subf %17, %16 : vector<8x32xf32>
    %cst_11 = arith.constant 5.000000e-01 : f32
    %19 = vector.broadcast %cst_11 : f32 to vector<8x32xf32>
    %20 = arith.mulf %19, %18 : vector<8x32xf32>
    %c0_12 = arith.constant 0 : index
    %c0_13 = arith.constant 0 : index
    %21 = vector.load %arg6[%c0_12, %c0_13] : memref<32x16xf32, #tpu.memory_space<vmem>>, vector<32x16xf32>
    %cst_14 = arith.constant dense<0.000000e+00> : vector<8x16xf32>
    %22 = tpu.matmul %20, %21, %cst_14 {dimension_numbers = #tpu.dot_dimension_numbers<[1], [0], [0], [1], [0, 0, 1, 1], [], []>} : vector<8x32xf32>, vector<32x16xf32>, vector<8x16xf32> -> vector<8x16xf32>
    %c0_15 = arith.constant 0 : index
    %c0_16 = arith.constant 0 : index
    %23 = vector.load %arg7[%c0_15, %c0_16] : memref<1x16xf32, #tpu.memory_space<vmem>>, vector<1x16xf32>
    %24 = vector.broadcast %23 : vector<1x16xf32> to vector<8x16xf32>
    %25 = arith.addf %22, %24 : vector<8x16xf32>
    %c0_17 = arith.constant 0 : index
    %c0_18 = arith.constant 0 : index
    %26 = vector.load %arg8[%c0_17, %c0_18] : memref<8x16xf32, #tpu.memory_space<vmem>>, vector<8x16xf32>
    tpu.vector_store %arg8[%c0_17, %c0_18], %25 {strides = array<i32>} : memref<8x16xf32, #tpu.memory_space<vmem>>, vector<8x16xf32>,
    return
  }
  func.func @transform_0(%arg0: i32) -> (i32, i32) {
    %c0_i32 = arith.constant 0 : i32
    %c0_i32_0 = arith.constant 0 : i32
    return %arg0, %c0_i32 : i32, i32
  }
  func.func @transform_1(%arg0: i32) -> (i32, i32) {
    %c0_i32 = arith.constant 0 : i32
    %c0_i32_0 = arith.constant 0 : i32
    return %arg0, %c0_i32 : i32, i32
  }
  func.func @transform_2(%arg0: i32) -> (i32, i32) {
    %c0_i32 = arith.constant 0 : i32
    %c0_i32_0 = arith.constant 0 : i32
    %c0_i32_1 = arith.constant 0 : i32
    return %c0_i32, %c0_i32_0 : i32, i32
  }
  func.func @transform_3(%arg0: i32) -> (i32, i32) {
    %c0_i32 = arith.constant 0 : i32
    %c0_i32_0 = arith.constant 0 : i32
    %c0_i32_1 = arith.constant 0 : i32
    return %c0_i32, %c0_i32_0 : i32, i32
  }
  func.func @transform_4(%arg0: i32) -> (i32, i32) {
    %c0_i32 = arith.constant 0 : i32
    %c0_i32_0 = arith.constant 0 : i32
    %c0_i32_1 = arith.constant 0 : i32
    return %c0_i32, %c0_i32_0 : i32, i32
  }
  func.func @transform_5(%arg0: i32) -> (i32, i32) {
    %c0_i32 = arith.constant 0 : i32
    %c0_i32_0 = arith.constant 0 : i32
    %c0_i32_1 = arith.constant 0 : i32
    return %c0_i32, %c0_i32_0 : i32, i32
  }
  func.func @transform_6(%arg0: i32) -> (i32, i32) {
    %c0_i32 = arith.constant 0 : i32
    %c0_i32_0 = arith.constant 0 : i32
    %c0_i32_1 = arith.constant 0 : i32
    return %c0_i32, %c0_i32_0 : i32, i32
  }
  func.func @transform_7(%arg0: i32) -> (i32, i32) {
    %c0_i32 = arith.constant 0 : i32
    %c0_i32_0 = arith.constant 0 : i32
    return %arg0, %c0_i32 : i32, i32
  }
}

</mosaic_0001>

<llo_original>
// kernel: tpu_custom_call.1
$region0: #{tpu_custom_call.1}
  #allocation0 [shape = 'u32[]', space=smem, size = 0x4, offset = 0x4, fixed_abs, tag = 'smem constant byte address 0x4 - core index']
  #allocation1 [shape = 'u32[144,128]{1,0:T(1,128)}', space=vmem, size = 0x12000, scoped, tag = 'internal scratch']
  %s0 = inlined_call_operand.vmem [shape: f32[8,160], index: 0, kind: input, shape index: {}]
  %s1 = inlined_call_operand.vmem [shape: f32[8,24], index: 1, kind: input, shape index: {}]
  %s2 = inlined_call_operand.vmem [shape: f32[160,64], index: 2, kind: input, shape index: {}]
  %s3 = inlined_call_operand.vmem [shape: f32[24,64], index: 3, kind: input, shape index: {}]
  %s4 = inlined_call_operand.vmem [shape: f32[1,64], index: 4, kind: input, shape index: {}]
  %s5 = inlined_call_operand.vmem [shape: f32[32,16], index: 5, kind: input, shape index: {}]
  %s6 = inlined_call_operand.vmem [shape: f32[1,16], index: 6, kind: input, shape index: {}]
  %s7 = inlined_call_operand.hbm [shape: f32[8,16], index: 7, kind: output, shape index: {}]
  %s8 = sld [smem:[#allocation0]]
  $region38: #{tpu_custom_call.1} parent=0
    _
  %s10 = ssub.s32 1, %s8
  %s11 = scalar_select 0, %s10, %s8
  $region1: #{tpu_custom_call.1} parent=0
    #allocation2 [shape = 'u8[4096]{0}', space=vmem, size = 0x1000, scoped, tag = 'output window, operand 0, single buffered']
    #allocation3 [shape = 's32[1]{0}', space=sflag, size = 0x4, scoped, tag = 'scoped memory for tpu_custom_call.1']
    %12 = vsyncpa [#allocation3], 0
    // Predicated region
    $region2: #{tpu_custom_call.1} parent=1 // pred_check
      _
    $region3: #{tpu_custom_call.1} parent=1 // pred_check_branch
      %14 = sbr.rel (0) target = $region5
    $region4: #{tpu_custom_call.1} parent=1 // pred_region
      _
    $region5: #{tpu_custom_call.1} parent=1 // pred_fallthru
      _
    // Predicated region
    $region6: #{tpu_custom_call.1} parent=1 // pred_check
      _
    $region7: #{tpu_custom_call.1} parent=1 // pred_check_branch
      %16 = sbr.rel (0) target = $region9
    $region8: #{tpu_custom_call.1} parent=1 // pred_region
      _
    $region9: #{tpu_custom_call.1} parent=1 // pred_fallthru
      _
    // Predicated region
    $region10: #{tpu_custom_call.1} parent=1 // pred_check
      _
    $region11: #{tpu_custom_call.1} parent=1 // pred_check_branch
      %18 = sbr.rel (0) target = $region13
    $region12: #{tpu_custom_call.1} parent=1 // pred_region
      _
    $region13: #{tpu_custom_call.1} parent=1 // pred_fallthru
      _
    // Predicated region
    $region14: #{tpu_custom_call.1} parent=1 // pred_check
      _
    $region15: #{tpu_custom_call.1} parent=1 // pred_check_branch
      %20 = sbr.rel (0) target = $region17
    $region16: #{tpu_custom_call.1} parent=1 // pred_region
      _
    $region17: #{tpu_custom_call.1} parent=1 // pred_fallthru
      _
    // Predicated region
    $region18: #{tpu_custom_call.1} parent=1 // pred_check
      _
    $region19: #{tpu_custom_call.1} parent=1 // pred_check_branch
      %22 = sbr.rel (0) target = $region21
    $region20: #{tpu_custom_call.1} parent=1 // pred_region
      _
    $region21: #{tpu_custom_call.1} parent=1 // pred_fallthru
      _
    // Predicated region
    $region22: #{tpu_custom_call.1} parent=1 // pred_check
      _
    $region23: #{tpu_custom_call.1} parent=1 // pred_check_branch
      %24 = sbr.rel (0) target = $region25
    $region24: #{tpu_custom_call.1} parent=1 // pred_region
      _
    $region25: #{tpu_custom_call.1} parent=1 // pred_fallthru
      _
    // Predicated region
    $region26: #{tpu_custom_call.1} parent=1 // pred_check
      _
    $region27: #{tpu_custom_call.1} parent=1 // pred_check_branch
      %26 = sbr.rel (0) target = $region29
    $region28: #{tpu_custom_call.1} parent=1 // pred_region
      _
    $region29: #{tpu_custom_call.1} parent=1 // pred_fallthru
      _
    %v27 = vld [vmem:[%s0] sm:$0xff]
    %v28 = vld [vmem:[%s0 + $0x8] sm:$0xff]
    %v29 = vld [vmem:[%s1] sm:$0xff]
    %v30 = vld [vmem:[%s2] sm:$0xff]
    %v31 = vld [vmem:[%s2 + $0x8] sm:$0xff]
    %v32 = vld [vmem:[%s2 + $0x10] sm:$0xff]
    %v33 = vld [vmem:[%s2 + $0x18] sm:$0xff]
    %v34 = vld [vmem:[%s2 + $0x20] sm:$0xff]
    %v35 = vld [vmem:[%s2 + $0x28] sm:$0xff]
    %v36 = vld [vmem:[%s2 + $0x30] sm:$0xff]
    %v37 = vld [vmem:[%s2 + $0x38] sm:$0xff]
    %v38 = vld [vmem:[%s2 + $0x40] sm:$0xff]
    %v39 = vld [vmem:[%s2 + $0x48] sm:$0xff]
    %v40 = vld [vmem:[%s2 + $0x50] sm:$0xff]
    %v41 = vld [vmem:[%s2 + $0x58] sm:$0xff]
    %v42 = vld [vmem:[%s2 + $0x60] sm:$0xff]
    %v43 = vld [vmem:[%s2 + $0x68] sm:$0xff]
    %v44 = vld [vmem:[%s2 + $0x70] sm:$0xff]
    %v45 = vld [vmem:[%s2 + $0x78] sm:$0xff]
    %v46 = vld [vmem:[%s2 + $0x80] sm:$0xff]
    %v47 = vld [vmem:[%s2 + $0x88] sm:$0xff]
    %v48 = vld [vmem:[%s2 + $0x90] sm:$0xff]
    %v49 = vld [vmem:[%s2 + $0x98] sm:$0xff]
    %v50 = vld [vmem:[%s3] sm:$0xff]
    %v51 = vld [vmem:[%s3 + $0x8] sm:$0xff]
    %v52 = vld [vmem:[%s3 + $0x10] sm:$0xff]
    %vm53 = vcmask 195584
    %v55 = vsel %vm53, %v29, 0
    %57 = vmatprep.subr.mxu0 0.0
    %58 = vmatpush1.msra.mxu0 %v50
    %59 = vmatprep.subr.mxu0 0.0
    %60 = vmatpush1.msra.mxu0 %v51
    %61 = vmatprep.subr.mxu0 0.0
    %62 = vmatpush1.msra.mxu0 %v52
    %63 = vmatprep.subr.mxu0 0.0
    %64 = vmatpush1.msra.mxu0 0.0
    %65 = vmatprep.subr.mxu0 0.0
    %66 = vmatpush1.msra.mxu0 0.0
    %67 = vmatprep.subr.mxu0 0.0
    %68 = vmatpush1.msra.mxu0 0.0
    %69 = vmatprep.subr.mxu0 0.0
    %70 = vmatpush1.msra.mxu0 0.0
    %71 = vmatprep.subr.mxu0 0.0
    %72 = vmatpush1.msra.mxu0 0.0
    %73 = vmatprep.subr.mxu0 0.0
    %74 = vmatpush1.msra.mxu0 0.0
    %75 = vmatprep.subr.mxu0 0.0
    %76 = vmatpush1.msra.mxu0 0.0
    %77 = vmatprep.subr.mxu0 0.0
    %78 = vmatpush1.msra.mxu0 0.0
    %79 = vmatprep.subr.mxu0 0.0
    %80 = vmatpush1.msra.mxu0 0.0
    %81 = vmatprep.subr.mxu0 0.0
    %82 = vmatpush1.msra.mxu0 0.0
    %83 = vmatprep.subr.mxu0 0.0
    %84 = vmatpush1.msra.mxu0 0.0
    %85 = vmatprep.subr.mxu0 0.0
    %86 = vmatpush1.msra.mxu0 0.0
    %87 = vmatprep.subr.mxu0 0.0
    %88 = vmatpush1.msra.mxu0 0.0
    %89 = vmatprep.subr.mxu0 0.0
    %90 = vmatpush1.msra.mxu0 0.0
    %91 = vmatprep.subr.mxu0 0.0
    %92 = vmatpush1.msra.mxu0 0.0
    %93 = vmatprep.subr.mxu0 0.0
    %94 = vmatpush1.msra.mxu0 0.0
    %95 = vmatprep.subr.mxu0 0.0
    %96 = vmatpush1.msra.mxu0 0.0
    %97 = vmatprep.subr.mxu0 0.0
    %98 = vmatpush1.msra.mxu0 0.0
    %99 = vmatprep.subr.mxu0 0.0
    %100 = vmatpush1.msra.mxu0 0.0
    %101 = vmatprep.subr.mxu0 0.0
    %102 = vmatpush1.msra.mxu0 0.0
    %103 = vmatprep.subr.mxu0 0.0
    %104 = vmatpush1.msra.mxu0 0.0
    %105 = vmatprep.subr.mxu0 0.0
    %106 = vmatpush1.msra.mxu0 0.0
    %107 = vmatprep.subr.mxu0 0.0
    %108 = vmatpush1.msra.mxu0 0.0
    %109 = vmatprep.subr.mxu0 0.0
    %110 = vmatpush1.msra.mxu0 0.0
    %111 = vmatprep.subr.mxu0 0.0
    %112 = vmatpush1.msra.mxu0 0.0
    %113 = vmatprep.subr.mxu0 0.0
    %114 = vmatpush1.msra.mxu0 0.0
    %115 = vmatprep.subr.mxu0 0.0
    %116 = vmatpush1.msra.mxu0 0.0
    %117 = vmatprep.subr.mxu0 0.0
    %118 = vmatpush1.msra.mxu0 0.0
    %119 = vmatprep.subr.mxu0 0.0
    %120 = vmatpush1.msra.mxu0 0.0
    %121 = vmatprep.mubr.f32.mxu0 0.0
    %122 = vmatmul.mubr.f32.gmra.mrb[0].mxu0 %v55
    %v123 = vpop.f32.mrb[0].mxu0
    %v124 = vadd.f32 0.0, %v123
    %v125 = vpop.f32.mrb[0].mxu0
    %126 = vdwg.mxu0
    %vm127 = vcmask 261120
    %v129 = vsel %vm127, %v28, 0
    %131 = vmatprep.subr.mxu0 0.0
    %132 = vmatpush1.msra.mxu0 %v30
    %133 = vmatprep.subr.mxu0 0.0
    %134 = vmatpush1.msra.mxu0 %v31
    %135 = vmatprep.subr.mxu0 0.0
    %136 = vmatpush1.msra.mxu0 %v32
    %137 = vmatprep.subr.mxu0 0.0
    %138 = vmatpush1.msra.mxu0 %v33
    %139 = vmatprep.subr.mxu0 0.0
    %140 = vmatpush1.msra.mxu0 %v34
    %141 = vmatprep.subr.mxu0 0.0
    %142 = vmatpush1.msra.mxu0 %v35
    %143 = vmatprep.subr.mxu0 0.0
    %144 = vmatpush1.msra.mxu0 %v36
    %145 = vmatprep.subr.mxu0 0.0
    %146 = vmatpush1.msra.mxu0 %v37
    %147 = vmatprep.subr.mxu0 0.0
    %148 = vmatpush1.msra.mxu0 %v38
    %149 = vmatprep.subr.mxu0 0.0
    %150 = vmatpush1.msra.mxu0 %v39
    %151 = vmatprep.subr.mxu0 0.0
    %152 = vmatpush1.msra.mxu0 %v40
    %153 = vmatprep.subr.mxu0 0.0
    %154 = vmatpush1.msra.mxu0 %v41
    %155 = vmatprep.subr.mxu0 0.0
    %156 = vmatpush1.msra.mxu0 %v42
    %157 = vmatprep.subr.mxu0 0.0
    %158 = vmatpush1.msra.mxu0 %v43
    %159 = vmatprep.subr.mxu0 0.0
    %160 = vmatpush1.msra.mxu0 %v44
    %161 = vmatprep.subr.mxu0 0.0
    %162 = vmatpush1.msra.mxu0 %v45
    %163 = vmatprep.subr.mxu0 0.0
    %164 = vmatpush1.msra.mxu0 %v46
    %165 = vmatprep.subr.mxu0 0.0
    %166 = vmatpush1.msra.mxu0 %v47
    %167 = vmatprep.subr.mxu0 0.0
    %168 = vmatpush1.msra.mxu0 %v48
    %169 = vmatprep.subr.mxu0 0.0
    %170 = vmatpush1.msra.mxu0 %v49
    %171 = vmatprep.subr.mxu0 0.0
    %172 = vmatpush1.msra.mxu0 0.0
    %173 = vmatprep.subr.mxu0 0.0
    %174 = vmatpush1.msra.mxu0 0.0
    %175 = vmatprep.subr.mxu0 0.0
    %176 = vmatpush1.msra.mxu0 0.0
    %177 = vmatprep.subr.mxu0 0.0
    %178 = vmatpush1.msra.mxu0 0.0
    %179 = vmatprep.subr.mxu0 0.0
    %180 = vmatpush1.msra.mxu0 0.0
    %181 = vmatprep.subr.mxu0 0.0
    %182 = vmatpush1.msra.mxu0 0.0
    %183 = vmatprep.subr.mxu0 0.0
    %184 = vmatpush1.msra.mxu0 0.0
    %185 = vmatprep.subr.mxu0 0.0
    %186 = vmatpush1.msra.mxu0 0.0
    %187 = vmatprep.subr.mxu0 0.0
    %188 = vmatpush1.msra.mxu0 0.0
    %189 = vmatprep.subr.mxu0 0.0
    %190 = vmatpush1.msra.mxu0 0.0
    %191 = vmatprep.subr.mxu0 0.0
    %192 = vmatpush1.msra.mxu0 0.0
    %193 = vmatprep.subr.mxu0 0.0
    %194 = vmatpush1.msra.mxu0 0.0
    %195 = vmatprep.mubr.f32.mxu0 %v129
    %196 = vmatmul.mubr.f32.gmra.mrb[0].mxu0 %v27
    %v197 = vpop.f32.mrb[0].mxu0
    %v198 = vadd.f32 %v124, %v197
    %v199 = vpop.f32.mrb[0].mxu0
    %200 = vdwg.mxu0
    %v201 = vld [vmem:[%s4] sm:$0x1]
    %v203 = vlaneseq
    %v204 = vshrl.u32 %v203, 7
    %v205 = vsub.s32 0, %v204
    %v206 = vrot.slane %v201, %v205
    %v208 = vadd.f32 %v198, %v206
    %v209 = vmul.f32 %v27, %v27
    %v210 = vmul.f32 %v28, %v28
    %v212 = vsel %vm127, %v210, 0
    %214 = vmatprep.subr.mxu0 0.0
    %215 = vmatpush1.msra.mxu0 %v30
    %216 = vmatprep.subr.mxu0 0.0
    %217 = vmatpush1.msra.mxu0 %v31
    %218 = vmatprep.subr.mxu0 0.0
    %219 = vmatpush1.msra.mxu0 %v32
    %220 = vmatprep.subr.mxu0 0.0
    %221 = vmatpush1.msra.mxu0 %v33
    %222 = vmatprep.subr.mxu0 0.0
    %223 = vmatpush1.msra.mxu0 %v34
    %224 = vmatprep.subr.mxu0 0.0
    %225 = vmatpush1.msra.mxu0 %v35
    %226 = vmatprep.subr.mxu0 0.0
    %227 = vmatpush1.msra.mxu0 %v36
    %228 = vmatprep.subr.mxu0 0.0
    %229 = vmatpush1.msra.mxu0 %v37
    %230 = vmatprep.subr.mxu0 0.0
    %231 = vmatpush1.msra.mxu0 %v38
    %232 = vmatprep.subr.mxu0 0.0
    %233 = vmatpush1.msra.mxu0 %v39
    %234 = vmatprep.subr.mxu0 0.0
    %235 = vmatpush1.msra.mxu0 %v40
    %236 = vmatprep.subr.mxu0 0.0
    %237 = vmatpush1.msra.mxu0 %v41
    %238 = vmatprep.subr.mxu0 0.0
    %239 = vmatpush1.msra.mxu0 %v42
    %240 = vmatprep.subr.mxu0 0.0
    %241 = vmatpush1.msra.mxu0 %v43
    %242 = vmatprep.subr.mxu0 0.0
    %243 = vmatpush1.msra.mxu0 %v44
    %244 = vmatprep.subr.mxu0 0.0
    %245 = vmatpush1.msra.mxu0 %v45
    %246 = vmatprep.subr.mxu0 0.0
    %247 = vmatpush1.msra.mxu0 %v46
    %248 = vmatprep.subr.mxu0 0.0
    %249 = vmatpush1.msra.mxu0 %v47
    %250 = vmatprep.subr.mxu0 0.0
    %251 = vmatpush1.msra.mxu0 %v48
    %252 = vmatprep.subr.mxu0 0.0
    %253 = vmatpush1.msra.mxu0 %v49
    %254 = vmatprep.subr.mxu0 0.0
    %255 = vmatpush1.msra.mxu0 0.0
    %256 = vmatprep.subr.mxu0 0.0
    %257 = vmatpush1.msra.mxu0 0.0
    %258 = vmatprep.subr.mxu0 0.0
    %259 = vmatpush1.msra.mxu0 0.0
    %260 = vmatprep.subr.mxu0 0.0
    %261 = vmatpush1.msra.mxu0 0.0
    %262 = vmatprep.subr.mxu0 0.0
    %263 = vmatpush1.msra.mxu0 0.0
    %264 = vmatprep.subr.mxu0 0.0
    %265 = vmatpush1.msra.mxu0 0.0
    %266 = vmatprep.subr.mxu0 0.0
    %267 = vmatpush1.msra.mxu0 0.0
    %268 = vmatprep.subr.mxu0 0.0
    %269 = vmatpush1.msra.mxu0 0.0
    %270 = vmatprep.subr.mxu0 0.0
    %271 = vmatpush1.msra.mxu0 0.0
    %272 = vmatprep.subr.mxu0 0.0
    %273 = vmatpush1.msra.mxu0 0.0
    %274 = vmatprep.subr.mxu0 0.0
    %275 = vmatpush1.msra.mxu0 0.0
    %276 = vmatprep.subr.mxu0 0.0
    %277 = vmatpush1.msra.mxu0 0.0
    %278 = vmatprep.mubr.f32.mxu0 %v212
    %279 = vmatmul.mubr.f32.gmra.mrb[0].mxu0 %v209
    %v280 = vpop.f32.mrb[0].mxu0
    %v281 = vadd.f32 0.0, %v280
    %v282 = vpop.f32.mrb[0].mxu0
    %283 = vdwg.mxu0
    %v284 = vmul.f32 %v208, %v208
    %286 = vrot.lane.b32.xlu0 %v284, 96
    %v287 = vpop.permute.xlu0 %286
    %v289 = vadd.f32 %v281, %v287
    %v290 = vsub.f32 %v284, %v289
    %v291 = vmul.f32 %v290, 0.5
    %v292 = vld [vmem:[%s5] sm:$0xff]
    %v293 = vld [vmem:[%s5 + $0x8] sm:$0xff]
    %v294 = vld [vmem:[%s5 + $0x10] sm:$0xff]
    %v295 = vld [vmem:[%s5 + $0x18] sm:$0xff]
    %v296 = vld [vmem:[%s6] sm:$0x1]
    %v298 = vlaneseq
    %v299 = vshrl.u32 %v298, 7
    %v300 = vsub.s32 0, %v299
    %v301 = vrot.slane %v296, %v300
    %v304 = vsel %vm127, %v291, 0
    %306 = vmatprep.subr.mxu0 0.0
    %307 = vmatpush1.msra.mxu0 %v292
    %308 = vmatprep.subr.mxu0 0.0
    %309 = vmatpush1.msra.mxu0 %v293
    %310 = vmatprep.subr.mxu0 0.0
    %311 = vmatpush1.msra.mxu0 %v294
    %312 = vmatprep.subr.mxu0 0.0
    %313 = vmatpush1.msra.mxu0 %v295
    %314 = vmatprep.subr.mxu0 0.0
    %315 = vmatpush1.msra.mxu0 0.0
    %316 = vmatprep.subr.mxu0 0.0
    %317 = vmatpush1.msra.mxu0 0.0
    %318 = vmatprep.subr.mxu0 0.0
    %319 = vmatpush1.msra.mxu0 0.0
    %320 = vmatprep.subr.mxu0 0.0
    %321 = vmatpush1.msra.mxu0 0.0
    %322 = vmatprep.subr.mxu0 0.0
    %323 = vmatpush1.msra.mxu0 0.0
    %324 = vmatprep.subr.mxu0 0.0
    %325 = vmatpush1.msra.mxu0 0.0
    %326 = vmatprep.subr.mxu0 0.0
    %327 = vmatpush1.msra.mxu0 0.0
    %328 = vmatprep.subr.mxu0 0.0
    %329 = vmatpush1.msra.mxu0 0.0
    %330 = vmatprep.subr.mxu0 0.0
    %331 = vmatpush1.msra.mxu0 0.0
    %332 = vmatprep.subr.mxu0 0.0
    %333 = vmatpush1.msra.mxu0 0.0
    %334 = vmatprep.subr.mxu0 0.0
    %335 = vmatpush1.msra.mxu0 0.0
    %336 = vmatprep.subr.mxu0 0.0
    %337 = vmatpush1.msra.mxu0 0.0
    %338 = vmatprep.subr.mxu0 0.0
    %339 = vmatpush1.msra.mxu0 0.0
    %340 = vmatprep.subr.mxu0 0.0
    %341 = vmatpush1.msra.mxu0 0.0
    %342 = vmatprep.subr.mxu0 0.0
    %343 = vmatpush1.msra.mxu0 0.0
    %344 = vmatprep.subr.mxu0 0.0
    %345 = vmatpush1.msra.mxu0 0.0
    %346 = vmatprep.subr.mxu0 0.0
    %347 = vmatpush1.msra.mxu0 0.0
    %348 = vmatprep.subr.mxu0 0.0
    %349 = vmatpush1.msra.mxu0 0.0
    %350 = vmatprep.subr.mxu0 0.0
    %351 = vmatpush1.msra.mxu0 0.0
    %352 = vmatprep.subr.mxu0 0.0
    %353 = vmatpush1.msra.mxu0 0.0
    %354 = vmatprep.subr.mxu0 0.0
    %355 = vmatpush1.msra.mxu0 0.0
    %356 = vmatprep.subr.mxu0 0.0
    %357 = vmatpush1.msra.mxu0 0.0
    %358 = vmatprep.subr.mxu0 0.0
    %359 = vmatpush1.msra.mxu0 0.0
    %360 = vmatprep.subr.mxu0 0.0
    %361 = vmatpush1.msra.mxu0 0.0
    %362 = vmatprep.subr.mxu0 0.0
    %363 = vmatpush1.msra.mxu0 0.0
    %364 = vmatprep.subr.mxu0 0.0
    %365 = vmatpush1.msra.mxu0 0.0
    %366 = vmatprep.subr.mxu0 0.0
    %367 = vmatpush1.msra.mxu0 0.0
    %368 = vmatprep.subr.mxu0 0.0
    %369 = vmatpush1.msra.mxu0 0.0
    %370 = vmatprep.mubr.f32.mxu0 0.0
    %371 = vmatmul.mubr.f32.gmra.mrb[0].mxu0 %v304
    %v372 = vpop.f32.mrb[0].mxu0
    %v373 = vadd.f32 %v301, %v372
    %v374 = vpop.f32.mrb[0].mxu0
    %375 = vdwg.mxu0
    %vm376 = vcmask 130048
    %377 = vst.msk [vmem:[#allocation2] sm:$0xff] %vm376, %v373
    // Predicated region
    $region30: #{tpu_custom_call.1} parent=1 // pred_check
      _
    $region31: #{tpu_custom_call.1} parent=1 // pred_check_branch
      %379 = sbr.rel (0) target = $region33
    $region32: #{tpu_custom_call.1} parent=1 // pred_region
      %s381 = ssub.s32 128, 128
      %382 = vsyncadd [#allocation3], %s381
      %s384 = sshll.u32 [#allocation2], 4
      %s385 = int_to_ptr.vmem [resolvable:$true] %s384
      %387 = dma.vmem_to_hbm [thread:$0]  %s385, 128, %s7, [#allocation3]
    $region33: #{tpu_custom_call.1} parent=1 // pred_fallthru
      _
    // Predicated region
    $region34: #{tpu_custom_call.1} parent=1 // pred_check
      _
    $region35: #{tpu_custom_call.1} parent=1 // pred_check_branch
      %389 = sbr.rel (0) target = $region37
    $region36: #{tpu_custom_call.1} parent=1 // pred_region
      %390 = dma.done [#allocation3], 128
    $region37: #{tpu_custom_call.1} parent=1 // pred_fallthru
      _
    %391 = vsyncpa [#allocation3], 1

</llo_original>
